<compile_context>
chip_gen: v7x
topology: tpu7x:2x2x1
jax: 0.10.0
libtpu: 0.0.40
codegen_flags: <defaults>
</compile_context>

<pallas_src>
import math
import numpy as np
import jax
import jax.numpy as jnp
from jax.experimental import pallas as pl
from jax.experimental.pallas import tpu as pltpu

_LANE = 128
_SUBLANE = 8


def _pick_tile(dim, candidates):
    for c in candidates:
        if dim % c == 0:
            return c
    return dim


def _norm_scales(order):
    # 1/sqrt(n!) folded into the coefficients so the kernel uses the unnormalized
    # three-term recurrence (one fewer VALU multiply per element per order step).
    return np.array(
        [1.0 / math.sqrt(math.factorial(n)) for n in range(order + 1)],
        dtype=np.float32,
    )


def _make_local_kernel(order: int):
    """out[b, f] = sum_n c[n, f] * He_n(x[b, f]); c already includes 1/sqrt(n!)."""

    def kernel(x_ref, c_ref, o_ref):
        x = x_ref[...].astype(jnp.float32)            # (TB, TF)
        c = c_ref[...].astype(jnp.float32)            # (order+1, TF)
        # Pre-slice coefficient rows once, keep rank-2 (1, TF) views.
        c_rows = [c[n : n + 1, :] for n in range(order + 1)]

        acc = jnp.broadcast_to(c_rows[0], x.shape)    # c0 * He_0, He_0 == 1
        if order >= 1:
            h_prev = None
            h_curr = x                                # He_1(x) = x
            acc = acc + c_rows[1] * h_curr
            for n in range(1, order):
                if n == 1:
                    h_next = x * h_curr - 1.0         # He_0 == 1 (avoid ones array)
                else:
                    h_next = x * h_curr - float(n) * h_prev
                acc = acc + c_rows[n + 1] * h_next
                h_prev, h_curr = h_curr, h_next

        o_ref[...] = acc.astype(o_ref.dtype)

    return kernel


def _make_global_kernel(order: int):
    """out[b, f] = sum_n c[n] * He_n(x[b, f]); c is an (order+1,) SMEM scalar vector."""

    def kernel(c_ref, x_ref, o_ref):                  # c_ref: scalar-prefetch (SMEM)
        x = x_ref[...].astype(jnp.float32)            # (TB, TF)
        acc = jnp.broadcast_to(c_ref[0], x.shape)     # c0 * He_0
        if order >= 1:
            h_prev = None
            h_curr = x
            acc = acc + c_ref[1] * h_curr
            for n in range(1, order):
                if n == 1:
                    h_next = x * h_curr - 1.0
                else:
                    h_next = x * h_curr - float(n) * h_prev
                acc = acc + c_ref[n + 1] * h_next
                h_prev, h_curr = h_curr, h_next

        o_ref[...] = acc.astype(o_ref.dtype)

    return kernel


def hermite_poly_act(x, params, order: int, is_global: bool = False):
    """JAX/Pallas equivalent of the PyTorch `hermite_poly_act.forward`.

    x      : any shape; conv-style inputs are NCHW.
    params : if is_global  -> shape (order+1,)   shared coefficients
             if not global -> shape (F, order+1) per-flattened-feature coefficients
                              (F = prod(x.shape[1:]))
    """
    input_shape = x.shape
    B = input_shape[0]
    F = int(np.prod(input_shape[1:]))
    x2 = x.reshape(B, F)

    params = jnp.asarray(params, jnp.float32)
    scales = jnp.asarray(_norm_scales(order))         # (order+1,) 1/sqrt(n!)

    # --- pad features (lane dim) to a multiple of 128: lane-dense stores + pipelined grid
    F_pad = ((F + _LANE - 1) // _LANE) * _LANE
    if F_pad != F:
        x2 = jnp.pad(x2, ((0, 0), (0, F_pad - F)))

    # --- tile selection (mem-bound: big lane-dense blocks, bounded VMEM) ---
    TF = _pick_tile(F_pad, (1024, 512, 256, 128))
    if B % _SUBLANE == 0:
        TB = _pick_tile(B, (512, 256, 128, 64, 32, 16, 8))
    else:
        TB = B   # full-extent sublane block (allowed; typical only for tiny batches)
    grid = (B // TB, F_pad // TF)

    compiler_params = pltpu.CompilerParams(
        dimension_semantics=("parallel", "parallel"),
        vmem_limit_bytes=32 * 1024 * 1024,
    )
    out_shape = jax.ShapeDtypeStruct((B, F_pad), x.dtype)

    if is_global:
        assert params.shape == (order + 1,), params.shape
        gcoeffs = params * scales                      # fold 1/sqrt(n!) in
        out = pl.pallas_call(
            _make_global_kernel(order),
            out_shape=out_shape,
            grid_spec=pltpu.PrefetchScalarGridSpec(
                num_scalar_prefetch=1,                 # coeffs live in SMEM
                grid=grid,
                in_specs=[pl.BlockSpec((TB, TF), lambda i, j, c: (i, j))],
                out_specs=pl.BlockSpec((TB, TF), lambda i, j, c: (i, j)),
            ),
            compiler_params=compiler_params,
        )(gcoeffs, x2)
    else:
        assert params.shape == (F, order + 1), params.shape
        coeffs = (params * scales[None, :]).T          # (order+1, F), pre-scaled
        if F_pad != F:
            coeffs = jnp.pad(coeffs, ((0, 0), (0, F_pad - F)))
        out = pl.pallas_call(
            _make_local_kernel(order),
            out_shape=out_shape,
            grid_spec=pltpu.PrefetchScalarGridSpec(
                num_scalar_prefetch=0,
                grid=grid,
                in_specs=[
                    pl.BlockSpec((TB, TF), lambda i, j: (i, j)),
                    pl.BlockSpec((order + 1, TF), lambda i, j: (0, j)),
                ],
                out_specs=pl.BlockSpec((TB, TF), lambda i, j: (i, j)),
            ),
            compiler_params=compiler_params,
        )(x2, coeffs)

    if F_pad != F:
        out = out[:, :F]
    return out.reshape(input_shape)


# ---------------- pure-JAX reference (explicit power formulas) ----------------
def _ref_hermite_polys(x, order):
    fact = math.factorial
    polys = [
        jnp.ones_like(x),
        x,
        (x**2 - 1) / math.sqrt(fact(2)),
        (x**3 - 3 * x) / math.sqrt(fact(3)),
        (x**4 - 6 * x**2 + 3) / math.sqrt(fact(4)),
        (x**5 - 10 * x**3 + 15 * x) / math.sqrt(fact(5)),
        (x**6 - 15 * x**4 + 45 * x**2 - 15) / math.sqrt(fact(6)),
    ]
    return polys[: order + 1]


def _ref_local(x, params, order):
    B = x.shape[0]
    F = int(np.prod(x.shape[1:]))
    xf = x.reshape(B, F).astype(jnp.float32)
    polys = _ref_hermite_polys(xf, order)              # each (B, F)
    out = jnp.zeros_like(xf)
    for i in range(order + 1):
        out = out + params[:, i][None, :] * polys[i]
    return out.reshape(x.shape)


if __name__ == "__main__":
    key = jax.random.PRNGKey(0)
    kx, kp, kx2, kp2 = jax.random.split(key, 4)

    # Small NCHW conv-like input.
    B, C, H, W = 2, 4, 16, 16
    order = 3
    F = C * H * W

    x = jax.random.normal(kx, (B, C, H, W), dtype=jnp.float32)
    params = 0.5 * jax.random.normal(kp, (F, order + 1), dtype=jnp.float32)

    # Per-feature (is_global=False) path.
    out = jax.block_until_ready(hermite_poly_act(x, params, order, is_global=False))
    ref = _ref_local(x, params, order)
    np.testing.assert_allclose(np.asarray(out), np.asarray(ref), rtol=1e-5, atol=1e-4)

    # Shared-coefficient (is_global=True) path: coeffs go through SMEM scalar prefetch.
    gparams = jnp.array([0.1, 0.2, 0.3, 0.4], dtype=jnp.float32)
    out_g = jax.block_until_ready(hermite_poly_act(x, gparams, order, is_global=True))
    ref_g = _ref_local(x, jnp.broadcast_to(gparams[None, :], (F, order + 1)), order)
    np.testing.assert_allclose(np.asarray(out_g), np.asarray(ref_g), rtol=1e-5, atol=1e-4)

    # Non-128-multiple feature count + higher order (exercises lane-padding path).
    B2, C2, H2, W2 = 3, 3, 5, 7
    order2 = 5
    F2 = C2 * H2 * W2
    x_b = jax.random.normal(kx2, (B2, C2, H2, W2), dtype=jnp.float32)
    params_b = 0.3 * jax.random.normal(kp2, (F2, order2 + 1), dtype=jnp.float32)
    out_b = jax.block_until_ready(hermite_poly_act(x_b, params_b, order2, is_global=False))
    ref_b = _ref_local(x_b, params_b, order2)
    np.testing.assert_allclose(np.asarray(out_b), np.asarray(ref_b), rtol=1e-5, atol=1e-4)

    print("KERNEL_OK")
</pallas_src>

<mosaic_0001>
module attributes {stable_mosaic.version = 11 : i64} {
  func.func @kernel(%arg0: i32, %arg1: i32, %arg2: memref<2x1024xf32, #tpu.memory_space<vmem>>, %arg3: memref<4x1024xf32, #tpu.memory_space<vmem>>, %arg4: memref<2x1024xf32, #tpu.memory_space<vmem>>) attributes {dimension_semantics = [#tpu.dimension_semantics<parallel>, #tpu.dimension_semantics<parallel>], iteration_bounds = array<i64: 1, 1>, scalar_prefetch = 0 : i64, scratch_operands = 0 : i64, tpu.core_type = #tpu.core_type<tc>, window_params = [{transform_indices = @transform_0, window_bounds = array<i64: 2, 1024>}, {transform_indices = @transform_1, window_bounds = array<i64: 4, 1024>}, {transform_indices = @transform_2, window_bounds = array<i64: 2, 1024>}]} {
    %c0 = arith.constant 0 : index
    %c0_0 = arith.constant 0 : index
    %0 = vector.load %arg2[%c0, %c0_0] : memref<2x1024xf32, #tpu.memory_space<vmem>>, vector<2x1024xf32>
    %c0_1 = arith.constant 0 : index
    %c0_2 = arith.constant 0 : index
    %1 = vector.load %arg3[%c0_1, %c0_2] : memref<4x1024xf32, #tpu.memory_space<vmem>>, vector<4x1024xf32>
    %2 = vector.extract_strided_slice %1 {offsets = [0, 0], sizes = [1, 1024], strides = [1, 1]} : vector<4x1024xf32> to vector<1x1024xf32>
    %3 = vector.extract_strided_slice %1 {offsets = [1, 0], sizes = [1, 1024], strides = [1, 1]} : vector<4x1024xf32> to vector<1x1024xf32>
    %4 = vector.extract_strided_slice %1 {offsets = [2, 0], sizes = [1, 1024], strides = [1, 1]} : vector<4x1024xf32> to vector<1x1024xf32>
    %5 = vector.extract_strided_slice %1 {offsets = [3, 0], sizes = [1, 1024], strides = [1, 1]} : vector<4x1024xf32> to vector<1x1024xf32>
    %6 = vector.shape_cast %2 : vector<1x1024xf32> to vector<1x1024xf32>
    %7 = vector.broadcast %6 : vector<1x1024xf32> to vector<2x1024xf32>
    %8 = vector.broadcast %3 : vector<1x1024xf32> to vector<2x1024xf32>
    %9 = arith.mulf %8, %0 : vector<2x1024xf32>
    %10 = arith.addf %7, %9 : vector<2x1024xf32>
    %11 = arith.mulf %0, %0 : vector<2x1024xf32>
    %cst = arith.constant 1.000000e+00 : f32
    %12 = vector.broadcast %cst : f32 to vector<2x1024xf32>
    %13 = arith.subf %11, %12 : vector<2x1024xf32>
    %14 = vector.broadcast %4 : vector<1x1024xf32> to vector<2x1024xf32>
    %15 = arith.mulf %14, %13 : vector<2x1024xf32>
    %16 = arith.addf %10, %15 : vector<2x1024xf32>
    %17 = arith.mulf %0, %13 : vector<2x1024xf32>
    %cst_3 = arith.constant 2.000000e+00 : f32
    %18 = vector.broadcast %cst_3 : f32 to vector<2x1024xf32>
    %19 = arith.mulf %18, %0 : vector<2x1024xf32>
    %20 = arith.subf %17, %19 : vector<2x1024xf32>
    %21 = vector.broadcast %5 : vector<1x1024xf32> to vector<2x1024xf32>
    %22 = arith.mulf %21, %20 : vector<2x1024xf32>
    %23 = arith.addf %16, %22 : vector<2x1024xf32>
    %c0_4 = arith.constant 0 : index
    %c0_5 = arith.constant 0 : index
    %24 = vector.load %arg4[%c0_4, %c0_5] : memref<2x1024xf32, #tpu.memory_space<vmem>>, vector<2x1024xf32>
    tpu.vector_store %arg4[%c0_4, %c0_5], %23 {strides = array<i32>} : memref<2x1024xf32, #tpu.memory_space<vmem>>, vector<2x1024xf32>,
    return
  }
  func.func @transform_0(%arg0: i32, %arg1: i32) -> (i32, i32) {
    %c0_i32 = arith.constant 0 : i32
    return %arg0, %arg1 : i32, i32
  }
  func.func @transform_1(%arg0: i32, %arg1: i32) -> (i32, i32) {
    %c0_i32 = arith.constant 0 : i32
    %c0_i32_0 = arith.constant 0 : i32
    return %c0_i32, %arg1 : i32, i32
  }
  func.func @transform_2(%arg0: i32, %arg1: i32) -> (i32, i32) {
    %c0_i32 = arith.constant 0 : i32
    return %arg0, %arg1 : i32, i32
  }
}

</mosaic_0001>

<llo_original>
// kernel: tpu_custom_call.1
$region0: #{tpu_custom_call.1}
  #allocation0 [shape = 'u32[]', space=smem, size = 0x4, offset = 0x4, fixed_abs, tag = 'smem constant byte address 0x4 - core index']
  #allocation1 [shape = 'u32[144,128]{1,0:T(1,128)}', space=vmem, size = 0x12000, scoped, tag = 'internal scratch']
  %s0 = inlined_call_operand.hbm [shape: f32[2,1024], index: 0, kind: input, shape index: {}]
  %s1 = inlined_call_operand.hbm [shape: f32[4,1024], index: 1, kind: input, shape index: {}]
  %s2 = inlined_call_operand.hbm [shape: f32[2,1024], index: 2, kind: output, shape index: {}]
  %s3 = sld [smem:[#allocation0]]
  $region26: #{tpu_custom_call.1} parent=0
    _
  %s5 = ssub.s32 1, %s3
  %s6 = scalar_select 0, %s5, %s3
  $region1: #{tpu_custom_call.1} parent=0
    #allocation2 [shape = 'u8[8192]{0}', space=vmem, size = 0x2000, scoped, tag = 'input window, operand 0, single buffered']
    #allocation3 [shape = 's32[1]{0}', space=sflag, size = 0x4, scoped, tag = 'scoped memory for tpu_custom_call.1']
    #allocation4 [shape = 's32[1]{0}', space=sflag, size = 0x4, scoped, tag = 'scoped memory for tpu_custom_call.1']
    #allocation5 [shape = 'u8[16384]{0}', space=vmem, size = 0x4000, scoped, tag = 'input window, operand 1, single buffered']
    #allocation6 [shape = 's32[1]{0}', space=sflag, size = 0x4, scoped, tag = 'scoped memory for tpu_custom_call.1']
    #allocation7 [shape = 'u8[8192]{0}', space=vmem, size = 0x2000, scoped, tag = 'output window, operand 0, single buffered']
    %7 = vsyncpa [#allocation3], 0
    %8 = vsyncpa [#allocation6], 0
    %9 = vsyncpa [#allocation4], 0
    // Predicated region
    $region2: #{tpu_custom_call.1} parent=1 // pred_check
      _
    $region3: #{tpu_custom_call.1} parent=1 // pred_check_branch
      %11 = sbr.rel (0) target = $region5
    $region4: #{tpu_custom_call.1} parent=1 // pred_region
      %s13 = ssub.s32 256, 256
      %14 = vsyncadd [#allocation3], %s13
      %s16 = sshll.u32 [#allocation2], 4
      %s17 = int_to_ptr.vmem [resolvable:$true] %s16
      %19 = dma.hbm_to_vmem [thread:$0]  %s0, 256, %s17, [#allocation3]
    $region5: #{tpu_custom_call.1} parent=1 // pred_fallthru
      _
    // Predicated region
    $region6: #{tpu_custom_call.1} parent=1 // pred_check
      _
    $region7: #{tpu_custom_call.1} parent=1 // pred_check_branch
      %21 = sbr.rel (0) target = $region9
    $region8: #{tpu_custom_call.1} parent=1 // pred_region
      %s23 = ssub.s32 512, 512
      %24 = vsyncadd [#allocation6], %s23
      %s26 = sshll.u32 [#allocation5], 4
      %s27 = int_to_ptr.vmem [resolvable:$true] %s26
      %29 = dma.hbm_to_vmem [thread:$0]  %s1, 512, %s27, [#allocation6]
    $region9: #{tpu_custom_call.1} parent=1 // pred_fallthru
      _
    // Predicated region
    $region10: #{tpu_custom_call.1} parent=1 // pred_check
      _
    $region11: #{tpu_custom_call.1} parent=1 // pred_check_branch
      %31 = sbr.rel (0) target = $region13
    $region12: #{tpu_custom_call.1} parent=1 // pred_region
      %32 = dma.done [#allocation3], 256
    $region13: #{tpu_custom_call.1} parent=1 // pred_fallthru
      _
    // Predicated region
    $region14: #{tpu_custom_call.1} parent=1 // pred_check
      _
    $region15: #{tpu_custom_call.1} parent=1 // pred_check_branch
      %34 = sbr.rel (0) target = $region17
    $region16: #{tpu_custom_call.1} parent=1 // pred_region
      %35 = dma.done [#allocation6], 512
    $region17: #{tpu_custom_call.1} parent=1 // pred_fallthru
      _
    %v36 = vld [vmem:[#allocation2] sm:$0xff]
    %v37 = vld [vmem:[#allocation2 + $0x8] sm:$0xff]
    %v38 = vld [vmem:[#allocation5] sm:$0xff]
    %v39 = vld [vmem:[#allocation5 + $0x8] sm:$0xff]
    %v40 = vld [vmem:[#allocation5 + $0x10] sm:$0xff]
    %v41 = vld [vmem:[#allocation5 + $0x18] sm:$0xff]
    %v46 = vlaneseq
    %v47 = vshrl.u32 %v46, 7
    %v48 = vsub.s32 0, %v47
    %v49 = vrot.slane %v38, %v48
    %v50 = vlaneseq
    %v51 = vshrl.u32 %v50, 7
    %v52 = vsub.s32 4, %v51
    %v53 = vrot.slane %v38, %v52
    %v54 = vlaneseq
    %v55 = vshrl.u32 %v54, 7
    %v56 = vsub.s32 0, %v55
    %v57 = vrot.slane %v39, %v56
    %v58 = vlaneseq
    %v59 = vshrl.u32 %v58, 7
    %v60 = vsub.s32 4, %v59
    %v61 = vrot.slane %v39, %v60
    %v62 = vlaneseq
    %v63 = vshrl.u32 %v62, 7
    %v64 = vsub.s32 0, %v63
    %v65 = vrot.slane %v40, %v64
    %v66 = vlaneseq
    %v67 = vshrl.u32 %v66, 7
    %v68 = vsub.s32 4, %v67
    %v69 = vrot.slane %v40, %v68
    %v70 = vlaneseq
    %v71 = vshrl.u32 %v70, 7
    %v72 = vsub.s32 0, %v71
    %v73 = vrot.slane %v41, %v72
    %v74 = vlaneseq
    %v75 = vshrl.u32 %v74, 7
    %v76 = vsub.s32 4, %v75
    %v77 = vrot.slane %v41, %v76
    %v86 = vlaneseq
    %v87 = vshrl.u32 %v86, 7
    %v88 = vsub.s32 0, %v87
    %v89 = vrot.slane %v49, %v88
    %v90 = vlaneseq
    %v91 = vshrl.u32 %v90, 7
    %v92 = vsub.s32 0, %v91
    %v93 = vrot.slane %v53, %v92
    %v94 = vlaneseq
    %v95 = vshrl.u32 %v94, 7
    %v96 = vsub.s32 0, %v95
    %v97 = vrot.slane %v57, %v96
    %v98 = vlaneseq
    %v99 = vshrl.u32 %v98, 7
    %v100 = vsub.s32 0, %v99
    %v101 = vrot.slane %v61, %v100
    %v102 = vlaneseq
    %v103 = vshrl.u32 %v102, 7
    %v104 = vsub.s32 0, %v103
    %v105 = vrot.slane %v65, %v104
    %v106 = vlaneseq
    %v107 = vshrl.u32 %v106, 7
    %v108 = vsub.s32 0, %v107
    %v109 = vrot.slane %v69, %v108
    %v110 = vlaneseq
    %v111 = vshrl.u32 %v110, 7
    %v112 = vsub.s32 0, %v111
    %v113 = vrot.slane %v73, %v112
    %v114 = vlaneseq
    %v115 = vshrl.u32 %v114, 7
    %v116 = vsub.s32 0, %v115
    %v117 = vrot.slane %v77, %v116
    %v118 = vlaneseq
    %v119 = vshrl.u32 %v118, 7
    %v120 = vsub.s32 1, %v119
    %v121 = vrot.slane %v38, %v120
    %v122 = vlaneseq
    %v123 = vshrl.u32 %v122, 7
    %v124 = vsub.s32 5, %v123
    %v125 = vrot.slane %v38, %v124
    %v126 = vlaneseq
    %v127 = vshrl.u32 %v126, 7
    %v128 = vsub.s32 1, %v127
    %v129 = vrot.slane %v39, %v128
    %v130 = vlaneseq
    %v131 = vshrl.u32 %v130, 7
    %v132 = vsub.s32 5, %v131
    %v133 = vrot.slane %v39, %v132
    %v134 = vlaneseq
    %v135 = vshrl.u32 %v134, 7
    %v136 = vsub.s32 1, %v135
    %v137 = vrot.slane %v40, %v136
    %v138 = vlaneseq
    %v139 = vshrl.u32 %v138, 7
    %v140 = vsub.s32 5, %v139
    %v141 = vrot.slane %v40, %v140
    %v142 = vlaneseq
    %v143 = vshrl.u32 %v142, 7
    %v144 = vsub.s32 1, %v143
    %v145 = vrot.slane %v41, %v144
    %v146 = vlaneseq
    %v147 = vshrl.u32 %v146, 7
    %v148 = vsub.s32 5, %v147
    %v149 = vrot.slane %v41, %v148
    %v158 = vlaneseq
    %v159 = vshrl.u32 %v158, 7
    %v160 = vsub.s32 1, %v159
    %v161 = vrot.slane %v121, %v160
    %v162 = vlaneseq
    %v163 = vshrl.u32 %v162, 7
    %v164 = vsub.s32 1, %v163
    %v165 = vrot.slane %v125, %v164
    %v166 = vlaneseq
    %v167 = vshrl.u32 %v166, 7
    %v168 = vsub.s32 1, %v167
    %v169 = vrot.slane %v129, %v168
    %v170 = vlaneseq
    %v171 = vshrl.u32 %v170, 7
    %v172 = vsub.s32 1, %v171
    %v173 = vrot.slane %v133, %v172
    %v174 = vlaneseq
    %v175 = vshrl.u32 %v174, 7
    %v176 = vsub.s32 1, %v175
    %v177 = vrot.slane %v137, %v176
    %v178 = vlaneseq
    %v179 = vshrl.u32 %v178, 7
    %v180 = vsub.s32 1, %v179
    %v181 = vrot.slane %v141, %v180
    %v182 = vlaneseq
    %v183 = vshrl.u32 %v182, 7
    %v184 = vsub.s32 1, %v183
    %v185 = vrot.slane %v145, %v184
    %v186 = vlaneseq
    %v187 = vshrl.u32 %v186, 7
    %v188 = vsub.s32 1, %v187
    %v189 = vrot.slane %v149, %v188
    %v192 = vcombine.high %v36, %v36
    %v194 = vunpack.c.l.s4 1983009808
    %v195 = vunpack.c.0.s8 %v194
    %v196 = vlaneseq
    %v197 = vshrl.u32 %v196, 7
    %v198 = vsub.s32 %v195, %v197
    %v199 = vrot.slane %v36, %v198
    %v201 = vunpack.c.l.s4 1983009808
    %v202 = vunpack.c.0.s8 %v201
    %v203 = vlaneseq
    %v204 = vshrl.u32 %v203, 7
    %v205 = vsub.s32 %v202, %v204
    %v206 = vrot.slane %v192, %v205
    %v207 = vcombine.high %v199, %v199
    %v208 = vcombine.high %v206, %v206
    %v209 = vcombine.high %v37, %v37
    %v211 = vunpack.c.l.s4 1983009808
    %v212 = vunpack.c.0.s8 %v211
    %v213 = vlaneseq
    %v214 = vshrl.u32 %v213, 7
    %v215 = vsub.s32 %v212, %v214
    %v216 = vrot.slane %v37, %v215
    %v218 = vunpack.c.l.s4 1983009808
    %v219 = vunpack.c.0.s8 %v218
    %v220 = vlaneseq
    %v221 = vshrl.u32 %v220, 7
    %v222 = vsub.s32 %v219, %v221
    %v223 = vrot.slane %v209, %v222
    %v224 = vcombine.high %v216, %v216
    %v225 = vcombine.high %v223, %v223
    %v234 = vmul.f32 %v161, %v199
    %v235 = vmul.f32 %v165, %v207
    %v236 = vmul.f32 %v169, %v206
    %v237 = vmul.f32 %v173, %v208
    %v238 = vmul.f32 %v177, %v216
    %v239 = vmul.f32 %v181, %v224
    %v240 = vmul.f32 %v185, %v223
    %v241 = vmul.f32 %v189, %v225
    %v242 = vadd.f32 %v89, %v234
    %v243 = vadd.f32 %v93, %v235
    %v244 = vadd.f32 %v97, %v236
    %v245 = vadd.f32 %v101, %v237
    %v246 = vadd.f32 %v105, %v238
    %v247 = vadd.f32 %v109, %v239
    %v248 = vadd.f32 %v113, %v240
    %v249 = vadd.f32 %v117, %v241
    %v250 = vmul.f32 %v36, %v36
    %v251 = vmul.f32 %v37, %v37
    %v252 = vsub.f32 %v250, 1.0
    %v253 = vsub.f32 %v251, 1.0
    %v254 = vlaneseq
    %v255 = vshrl.u32 %v254, 7
    %v256 = vsub.s32 2, %v255
    %v257 = vrot.slane %v38, %v256
    %v258 = vlaneseq
    %v259 = vshrl.u32 %v258, 7
    %v260 = vsub.s32 6, %v259
    %v261 = vrot.slane %v38, %v260
    %v262 = vlaneseq
    %v263 = vshrl.u32 %v262, 7
    %v264 = vsub.s32 2, %v263
    %v265 = vrot.slane %v39, %v264
    %v266 = vlaneseq
    %v267 = vshrl.u32 %v266, 7
    %v268 = vsub.s32 6, %v267
    %v269 = vrot.slane %v39, %v268
    %v270 = vlaneseq
    %v271 = vshrl.u32 %v270, 7
    %v272 = vsub.s32 2, %v271
    %v273 = vrot.slane %v40, %v272
    %v274 = vlaneseq
    %v275 = vshrl.u32 %v274, 7
    %v276 = vsub.s32 6, %v275
    %v277 = vrot.slane %v40, %v276
    %v278 = vlaneseq
    %v279 = vshrl.u32 %v278, 7
    %v280 = vsub.s32 2, %v279
    %v281 = vrot.slane %v41, %v280
    %v282 = vlaneseq
    %v283 = vshrl.u32 %v282, 7
    %v284 = vsub.s32 6, %v283
    %v285 = vrot.slane %v41, %v284
    %v294 = vlaneseq
    %v295 = vshrl.u32 %v294, 7
    %v296 = vsub.s32 2, %v295
    %v297 = vrot.slane %v257, %v296
    %v298 = vlaneseq
    %v299 = vshrl.u32 %v298, 7
    %v300 = vsub.s32 2, %v299
    %v301 = vrot.slane %v261, %v300
    %v302 = vlaneseq
    %v303 = vshrl.u32 %v302, 7
    %v304 = vsub.s32 2, %v303
    %v305 = vrot.slane %v265, %v304
    %v306 = vlaneseq
    %v307 = vshrl.u32 %v306, 7
    %v308 = vsub.s32 2, %v307
    %v309 = vrot.slane %v269, %v308
    %v310 = vlaneseq
    %v311 = vshrl.u32 %v310, 7
    %v312 = vsub.s32 2, %v311
    %v313 = vrot.slane %v273, %v312
    %v314 = vlaneseq
    %v315 = vshrl.u32 %v314, 7
    %v316 = vsub.s32 2, %v315
    %v317 = vrot.slane %v277, %v316
    %v318 = vlaneseq
    %v319 = vshrl.u32 %v318, 7
    %v320 = vsub.s32 2, %v319
    %v321 = vrot.slane %v281, %v320
    %v322 = vlaneseq
    %v323 = vshrl.u32 %v322, 7
    %v324 = vsub.s32 2, %v323
    %v325 = vrot.slane %v285, %v324
    %v328 = vcombine.high %v252, %v252
    %v330 = vunpack.c.l.s4 1983009808
    %v331 = vunpack.c.0.s8 %v330
    %v332 = vlaneseq
    %v333 = vshrl.u32 %v332, 7
    %v334 = vsub.s32 %v331, %v333
    %v335 = vrot.slane %v252, %v334
    %v337 = vunpack.c.l.s4 1983009808
    %v338 = vunpack.c.0.s8 %v337
    %v339 = vlaneseq
    %v340 = vshrl.u32 %v339, 7
    %v341 = vsub.s32 %v338, %v340
    %v342 = vrot.slane %v328, %v341
    %v343 = vcombine.high %v335, %v335
    %v344 = vcombine.high %v342, %v342
    %v345 = vcombine.high %v253, %v253
    %v347 = vunpack.c.l.s4 1983009808
    %v348 = vunpack.c.0.s8 %v347
    %v349 = vlaneseq
    %v350 = vshrl.u32 %v349, 7
    %v351 = vsub.s32 %v348, %v350
    %v352 = vrot.slane %v253, %v351
    %v354 = vunpack.c.l.s4 1983009808
    %v355 = vunpack.c.0.s8 %v354
    %v356 = vlaneseq
    %v357 = vshrl.u32 %v356, 7
    %v358 = vsub.s32 %v355, %v357
    %v359 = vrot.slane %v345, %v358
    %v360 = vcombine.high %v352, %v352
    %v361 = vcombine.high %v359, %v359
    %v370 = vmul.f32 %v297, %v335
    %v371 = vmul.f32 %v301, %v343
    %v372 = vmul.f32 %v305, %v342
    %v373 = vmul.f32 %v309, %v344
    %v374 = vmul.f32 %v313, %v352
    %v375 = vmul.f32 %v317, %v360
    %v376 = vmul.f32 %v321, %v359
    %v377 = vmul.f32 %v325, %v361
    %v378 = vadd.f32 %v242, %v370
    %v379 = vadd.f32 %v243, %v371
    %v380 = vadd.f32 %v244, %v372
    %v381 = vadd.f32 %v245, %v373
    %v382 = vadd.f32 %v246, %v374
    %v383 = vadd.f32 %v247, %v375
    %v384 = vadd.f32 %v248, %v376
    %v385 = vadd.f32 %v249, %v377
    %v386 = vmul.f32 %v36, %v252
    %v387 = vmul.f32 %v37, %v253
    %v388 = vmul.f32 %v36, 2.0
    %v389 = vmul.f32 %v37, 2.0
    %v390 = vsub.f32 %v386, %v388
    %v391 = vsub.f32 %v387, %v389
    %v392 = vlaneseq
    %v393 = vshrl.u32 %v392, 7
    %v394 = vsub.s32 3, %v393
    %v395 = vrot.slane %v38, %v394
    %v396 = vlaneseq
    %v397 = vshrl.u32 %v396, 7
    %v398 = vsub.s32 7, %v397
    %v399 = vrot.slane %v38, %v398
    %v400 = vlaneseq
    %v401 = vshrl.u32 %v400, 7
    %v402 = vsub.s32 3, %v401
    %v403 = vrot.slane %v39, %v402
    %v404 = vlaneseq
    %v405 = vshrl.u32 %v404, 7
    %v406 = vsub.s32 7, %v405
    %v407 = vrot.slane %v39, %v406
    %v408 = vlaneseq
    %v409 = vshrl.u32 %v408, 7
    %v410 = vsub.s32 3, %v409
    %v411 = vrot.slane %v40, %v410
    %v412 = vlaneseq
    %v413 = vshrl.u32 %v412, 7
    %v414 = vsub.s32 7, %v413
    %v415 = vrot.slane %v40, %v414
    %v416 = vlaneseq
    %v417 = vshrl.u32 %v416, 7
    %v418 = vsub.s32 3, %v417
    %v419 = vrot.slane %v41, %v418
    %v420 = vlaneseq
    %v421 = vshrl.u32 %v420, 7
    %v422 = vsub.s32 7, %v421
    %v423 = vrot.slane %v41, %v422
    %v432 = vlaneseq
    %v433 = vshrl.u32 %v432, 7
    %v434 = vsub.s32 3, %v433
    %v435 = vrot.slane %v395, %v434
    %v436 = vlaneseq
    %v437 = vshrl.u32 %v436, 7
    %v438 = vsub.s32 3, %v437
    %v439 = vrot.slane %v399, %v438
    %v440 = vlaneseq
    %v441 = vshrl.u32 %v440, 7
    %v442 = vsub.s32 3, %v441
    %v443 = vrot.slane %v403, %v442
    %v444 = vlaneseq
    %v445 = vshrl.u32 %v444, 7
    %v446 = vsub.s32 3, %v445
    %v447 = vrot.slane %v407, %v446
    %v448 = vlaneseq
    %v449 = vshrl.u32 %v448, 7
    %v450 = vsub.s32 3, %v449
    %v451 = vrot.slane %v411, %v450
    %v452 = vlaneseq
    %v453 = vshrl.u32 %v452, 7
    %v454 = vsub.s32 3, %v453
    %v455 = vrot.slane %v415, %v454
    %v456 = vlaneseq
    %v457 = vshrl.u32 %v456, 7
    %v458 = vsub.s32 3, %v457
    %v459 = vrot.slane %v419, %v458
    %v460 = vlaneseq
    %v461 = vshrl.u32 %v460, 7
    %v462 = vsub.s32 3, %v461
    %v463 = vrot.slane %v423, %v462
    %v466 = vcombine.high %v390, %v390
    %v468 = vunpack.c.l.s4 1983009808
    %v469 = vunpack.c.0.s8 %v468
    %v470 = vlaneseq
    %v471 = vshrl.u32 %v470, 7
    %v472 = vsub.s32 %v469, %v471
    %v473 = vrot.slane %v390, %v472
    %v475 = vunpack.c.l.s4 1983009808
    %v476 = vunpack.c.0.s8 %v475
    %v477 = vlaneseq
    %v478 = vshrl.u32 %v477, 7
    %v479 = vsub.s32 %v476, %v478
    %v480 = vrot.slane %v466, %v479
    %v481 = vcombine.high %v473, %v473
    %v482 = vcombine.high %v480, %v480
    %v483 = vcombine.high %v391, %v391
    %v485 = vunpack.c.l.s4 1983009808
    %v486 = vunpack.c.0.s8 %v485
    %v487 = vlaneseq
    %v488 = vshrl.u32 %v487, 7
    %v489 = vsub.s32 %v486, %v488
    %v490 = vrot.slane %v391, %v489
    %v492 = vunpack.c.l.s4 1983009808
    %v493 = vunpack.c.0.s8 %v492
    %v494 = vlaneseq
    %v495 = vshrl.u32 %v494, 7
    %v496 = vsub.s32 %v493, %v495
    %v497 = vrot.slane %v483, %v496
    %v498 = vcombine.high %v490, %v490
    %v499 = vcombine.high %v497, %v497
    %v508 = vmul.f32 %v435, %v473
    %v509 = vmul.f32 %v439, %v481
    %v510 = vmul.f32 %v443, %v480
    %v511 = vmul.f32 %v447, %v482
    %v512 = vmul.f32 %v451, %v490
    %v513 = vmul.f32 %v455, %v498
    %v514 = vmul.f32 %v459, %v497
    %v515 = vmul.f32 %v463, %v499
    %v516 = vadd.f32 %v378, %v508
    %v517 = vadd.f32 %v379, %v509
    %v518 = vadd.f32 %v380, %v510
    %v519 = vadd.f32 %v381, %v511
    %v520 = vadd.f32 %v382, %v512
    %v521 = vadd.f32 %v383, %v513
    %v522 = vadd.f32 %v384, %v514
    %v523 = vadd.f32 %v385, %v515
    %v532 = vcombine.low %v516, %v517
    %v533 = vcombine.low %v518, %v519
    %v535 = vunpack.c.l.s4 1983009808
    %v536 = vunpack.c.0.s8 %v535
    %v537 = vlaneseq
    %v538 = vshrl.u32 %v537, 7
    %v539 = vsub.s32 %v536, %v538
    %v540 = vrot.slane %v532, %v539
    %v542 = vunpack.c.l.s4 1983009808
    %v543 = vunpack.c.0.s8 %v542
    %v544 = vlaneseq
    %v545 = vshrl.u32 %v544, 7
    %v546 = vsub.s32 %v543, %v545
    %v547 = vrot.slane %v533, %v546
    %v548 = vcombine.low %v540, %v547
    %v549 = vcombine.low %v520, %v521
    %v550 = vcombine.low %v522, %v523
    %v552 = vunpack.c.l.s4 1983009808
    %v553 = vunpack.c.0.s8 %v552
    %v554 = vlaneseq
    %v555 = vshrl.u32 %v554, 7
    %v556 = vsub.s32 %v553, %v555
    %v557 = vrot.slane %v549, %v556
    %v559 = vunpack.c.l.s4 1983009808
    %v560 = vunpack.c.0.s8 %v559
    %v561 = vlaneseq
    %v562 = vshrl.u32 %v561, 7
    %v563 = vsub.s32 %v560, %v562
    %v564 = vrot.slane %v550, %v563
    %v565 = vcombine.low %v557, %v564
    %568 = vst [vmem:[#allocation7] sm:$0xff] %v548
    %569 = vst [vmem:[#allocation7 + $0x8] sm:$0xff] %v565
    // Predicated region
    $region18: #{tpu_custom_call.1} parent=1 // pred_check
      _
    $region19: #{tpu_custom_call.1} parent=1 // pred_check_branch
      %571 = sbr.rel (0) target = $region21
    $region20: #{tpu_custom_call.1} parent=1 // pred_region
      %s573 = ssub.s32 256, 256
      %574 = vsyncadd [#allocation4], %s573
      %s576 = sshll.u32 [#allocation7], 4
      %s577 = int_to_ptr.vmem [resolvable:$true] %s576
      %579 = dma.vmem_to_hbm [thread:$0]  %s577, 256, %s2, [#allocation4]
    $region21: #{tpu_custom_call.1} parent=1 // pred_fallthru
      _
    // Predicated region
    $region22: #{tpu_custom_call.1} parent=1 // pred_check
      _
    $region23: #{tpu_custom_call.1} parent=1 // pred_check_branch
      %581 = sbr.rel (0) target = $region25
    $region24: #{tpu_custom_call.1} parent=1 // pred_region
      %582 = dma.done [#allocation4], 256
    $region25: #{tpu_custom_call.1} parent=1 // pred_fallthru
      _
    %583 = vsyncpa [#allocation3], 1
    %584 = vsyncpa [#allocation6], 1
    %585 = vsyncpa [#allocation4], 1

</llo_original>
